<compile_context>
chip_gen: v6e
topology: v6e:2x2x1
jax: 0.10.0
libtpu: 0.0.40
codegen_flags: <defaults>
</compile_context>

<pallas_src>
import functools
import math

import jax
import jax.numpy as jnp
from jax import lax
from jax.experimental import pallas as pl
from jax.experimental.pallas import tpu as pltpu

# Feature order in x[..., f] (matches the PyTorch forward):
#   f=0: month(13), f=1: day(32), f=2: weekday(7), f=3: hour(24), f=4: minute(4, freq=='t')
_SIZES = {"month": 13, "day": 32, "weekday": 7, "hour": 24, "minute": 4}
_FEATURE_ORDER = ("month", "day", "weekday", "hour", "minute")

_LANE = 128
_SUBLANE = 8
_ROW_TILE_CAP = 1024


def _round_up(x, m):
    return (x + m - 1) // m * m


def _fixed_embedding_table(c_in, d_model):
    """Sinusoidal table identical to FixedEmbedding (d_model must be even)."""
    assert d_model % 2 == 0, "FixedEmbedding requires an even d_model"
    position = jnp.arange(c_in, dtype=jnp.float32)[:, None]
    div_term = jnp.exp(
        jnp.arange(0, d_model, 2, dtype=jnp.float32)
        * (-(math.log(10000.0) / d_model)))
    w = jnp.zeros((c_in, d_model), jnp.float32)
    w = w.at[:, 0::2].set(jnp.sin(position * div_term))
    w = w.at[:, 1::2].set(jnp.cos(position * div_term))
    return w


def make_fixed_temporal_tables(d_model, freq="h"):
    """Concatenate the fixed (non-learned) sub-tables; return (table, offsets)."""
    names = _FEATURE_ORDER if freq == "t" else _FEATURE_ORDER[:4]
    tables, offsets, off = [], [], 0
    for n in names:
        sz = _SIZES[n]
        tables.append(_fixed_embedding_table(sz, d_model))
        offsets.append(off)
        off += sz
    return jnp.concatenate(tables, axis=0), tuple(offsets)   # (V, D), per-feature offsets


def prepare_table(table):
    """One-time setup (hoisted out of the per-call path): zero-pad the rows to a
    lane-dense 128 contraction dim and split the f32 table into exact bf16
    hi/lo halves so the kernel can use two bf16 MXU passes with f32 accumulate."""
    V, D = table.shape
    vp = _round_up(V, _LANE)
    w = jnp.zeros((vp, D), jnp.float32).at[:V, :].set(table.astype(jnp.float32))
    w_hi = w.astype(jnp.bfloat16)
    w_lo = (w - w_hi.astype(jnp.float32)).astype(jnp.bfloat16)   # exact residual split
    return w_hi, w_lo


def _temporal_embed_kernel(x_ref, w_hi_ref, w_lo_ref, o_ref, *, offsets):
    # x_ref:  (mt, F) int32 time-feature indices for mt flattened (b, l) rows.
    # w_*_ref:(Vp, D) bf16 hi/lo halves of the concatenated table (VMEM-resident).
    # o_ref:  (mt, D).  out[r] = sum_f table[offsets[f] + x[r, f]].
    x = x_ref[...]                                               # (mt, F) int32
    mt = o_ref.shape[0]
    vp = w_hi_ref.shape[0]

    # Multi-hot build: boolean OR of the (disjoint-offset) equality masks, one
    # cast to bf16 at the end.
    lane_iota = lax.broadcasted_iota(jnp.int32, (mt, vp), 1)     # (mt, Vp)
    hot = None
    for f, off in enumerate(offsets):                            # static unroll (4-5 taps)
        eq = lane_iota == (x[:, f:f + 1] + off)                  # (mt, Vp) bool
        hot = eq if hot is None else jnp.logical_or(hot, eq)
    multi_hot = hot.astype(jnp.bfloat16)                         # exactly 0/1 in bf16

    # Two bf16 MXU passes (hi + lo) with a shared f32 accumulator replace the
    # ~3-pass f32 matmul; since multi_hot is 0/1 the products are exact.
    acc = jnp.dot(multi_hot, w_hi_ref[...], preferred_element_type=jnp.float32)
    acc = acc + jnp.dot(multi_hot, w_lo_ref[...], preferred_element_type=jnp.float32)
    o_ref[...] = acc.astype(o_ref.dtype)


def _pick_row_tile(total):
    # Single full block up to the cap (no pointless splitting on single-TC
    # v5e/v6e); above the cap, use an even number of near-equal multiple-of-8
    # steps so v7x's two TensorCores stay balanced.
    if total <= _ROW_TILE_CAP:
        return total                      # full-extent block: any size is legal
    steps = pl.cdiv(total, _ROW_TILE_CAP)
    if steps % 2:
        steps += 1                        # even step count for 2-TC sharding
    return _round_up(pl.cdiv(total, steps), _SUBLANE)


def temporal_embedding(x, w_hi, w_lo, offsets, out_dtype=jnp.float32):
    """x: (B, L, F) time-feature marks (float or int, >= len(offsets) columns);
    w_hi/w_lo: (Vp, D) bf16 hi/lo halves of the concatenated table (see
    prepare_table); offsets[f]: row offset of feature f's sub-table.
    Returns (B, L, D) = sum of the embedding lookups (out_dtype, default f32;
    pass bf16 to halve the output HBM stream if downstream is bf16)."""
    B, L, F = x.shape
    vp, D = w_hi.shape
    assert F >= len(offsets)

    total = B * L
    x_flat = x.reshape(total, F).astype(jnp.int32)   # mirrors x.long()

    mt = _pick_row_tile(total)
    grid = (pl.cdiv(total, mt),)

    out_flat = pl.pallas_call(
        functools.partial(_temporal_embed_kernel, offsets=offsets),
        out_shape=jax.ShapeDtypeStruct((total, D), out_dtype),
        grid=grid,
        in_specs=[
            pl.BlockSpec((mt, F), lambda i: (i, 0)),
            pl.BlockSpec((vp, D), lambda i: (0, 0)),   # constant block -> VMEM-resident
            pl.BlockSpec((vp, D), lambda i: (0, 0)),
        ],
        out_specs=pl.BlockSpec((mt, D), lambda i: (i, 0)),   # true-width output, no pad
        compiler_params=pltpu.CompilerParams(
            dimension_semantics=("parallel",),
            vmem_limit_bytes=32 << 20),
    )(x_flat, w_hi, w_lo)

    return out_flat.reshape(B, L, D)


def _reference(x, d_model, freq):
    """Pure-JAX reference: per-feature gather into the fixed f32 tables + sum."""
    table, offsets = make_fixed_temporal_tables(d_model, freq)
    xi = x.astype(jnp.int32)
    out = jnp.zeros(x.shape[:2] + (d_model,), jnp.float32)
    for f, off in enumerate(offsets):
        out = out + table[xi[..., f] + off]
    return out


if __name__ == "__main__":
    B, L, d_model, freq = 2, 16, 32, "t"   # freq='t' exercises all 5 embeddings
    names = _FEATURE_ORDER if freq == "t" else _FEATURE_ORDER[:4]

    key = jax.random.PRNGKey(0)
    cols = []
    for n in names:
        key, sub = jax.random.split(key)
        cols.append(jax.random.randint(sub, (B, L), 0, _SIZES[n], dtype=jnp.int32))
    # PyTorch passes float time marks and does x.long(); mimic that.
    x = jnp.stack(cols, axis=-1).astype(jnp.float32)          # (B, L, 5)

    table, offsets = make_fixed_temporal_tables(d_model, freq)
    w_hi, w_lo = prepare_table(table)                          # one-time setup
    out = temporal_embedding(x, w_hi, w_lo, offsets)
    out = jax.block_until_ready(out)

    ref = _reference(x, d_model, freq)
    assert out.shape == (B, L, d_model)
    assert jnp.allclose(out, ref, atol=1e-4, rtol=1e-4), "mismatch vs reference"

    print("KERNEL_OK")
</pallas_src>

<mosaic_0001>
module attributes {stable_mosaic.version = 11 : i64} {
  func.func @_temporal_embed_kernel(%arg0: i32, %arg1: memref<32x5xi32, #tpu.memory_space<vmem>>, %arg2: memref<128x32xbf16, #tpu.memory_space<vmem>>, %arg3: memref<128x32xbf16, #tpu.memory_space<vmem>>, %arg4: memref<32x32xf32, #tpu.memory_space<vmem>>) attributes {dimension_semantics = [#tpu.dimension_semantics<parallel>], iteration_bounds = array<i64: 1>, scalar_prefetch = 0 : i64, scratch_operands = 0 : i64, tpu.core_type = #tpu.core_type<tc>, window_params = [{transform_indices = @transform_0, window_bounds = array<i64: 32, 5>}, {pipeline_mode = #tpu.pipeline_mode<synchronous>, transform_indices = @transform_1, window_bounds = array<i64: 128, 32>}, {pipeline_mode = #tpu.pipeline_mode<synchronous>, transform_indices = @transform_2, window_bounds = array<i64: 128, 32>}, {transform_indices = @transform_3, window_bounds = array<i64: 32, 32>}]} {
    %c0 = arith.constant 0 : index
    %c0_0 = arith.constant 0 : index
    %0 = vector.load %arg1[%c0, %c0_0] : memref<32x5xi32, #tpu.memory_space<vmem>>, vector<32x5xi32>
    %1 = tpu.iota {dimensions = array<i32: 1>} : vector<32x128xi32>
    %2 = vector.extract_strided_slice %0 {offsets = [0, 0], sizes = [32, 1], strides = [1, 1]} : vector<32x5xi32> to vector<32x1xi32>
    %c0_i32 = arith.constant 0 : i32
    %3 = vector.broadcast %c0_i32 : i32 to vector<32x1xi32>
    %4 = arith.addi %2, %3 : vector<32x1xi32>
    %5 = vector.broadcast %4 : vector<32x1xi32> to vector<32x128xi32>
    %6 = arith.cmpi eq, %1, %5 : vector<32x128xi32>
    %7 = vector.extract_strided_slice %0 {offsets = [0, 1], sizes = [32, 1], strides = [1, 1]} : vector<32x5xi32> to vector<32x1xi32>
    %c13_i32 = arith.constant 13 : i32
    %8 = vector.broadcast %c13_i32 : i32 to vector<32x1xi32>
    %9 = arith.addi %7, %8 : vector<32x1xi32>
    %10 = vector.broadcast %9 : vector<32x1xi32> to vector<32x128xi32>
    %11 = arith.cmpi eq, %1, %10 : vector<32x128xi32>
    %12 = arith.ori %6, %11 : vector<32x128xi1>
    %13 = vector.extract_strided_slice %0 {offsets = [0, 2], sizes = [32, 1], strides = [1, 1]} : vector<32x5xi32> to vector<32x1xi32>
    %c45_i32 = arith.constant 45 : i32
    %14 = vector.broadcast %c45_i32 : i32 to vector<32x1xi32>
    %15 = arith.addi %13, %14 : vector<32x1xi32>
    %16 = vector.broadcast %15 : vector<32x1xi32> to vector<32x128xi32>
    %17 = arith.cmpi eq, %1, %16 : vector<32x128xi32>
    %18 = arith.ori %12, %17 : vector<32x128xi1>
    %19 = vector.extract_strided_slice %0 {offsets = [0, 3], sizes = [32, 1], strides = [1, 1]} : vector<32x5xi32> to vector<32x1xi32>
    %c52_i32 = arith.constant 52 : i32
    %20 = vector.broadcast %c52_i32 : i32 to vector<32x1xi32>
    %21 = arith.addi %19, %20 : vector<32x1xi32>
    %22 = vector.broadcast %21 : vector<32x1xi32> to vector<32x128xi32>
    %23 = arith.cmpi eq, %1, %22 : vector<32x128xi32>
    %24 = arith.ori %18, %23 : vector<32x128xi1>
    %25 = vector.extract_strided_slice %0 {offsets = [0, 4], sizes = [32, 1], strides = [1, 1]} : vector<32x5xi32> to vector<32x1xi32>
    %c76_i32 = arith.constant 76 : i32
    %26 = vector.broadcast %c76_i32 : i32 to vector<32x1xi32>
    %27 = arith.addi %25, %26 : vector<32x1xi32>
    %28 = vector.broadcast %27 : vector<32x1xi32> to vector<32x128xi32>
    %29 = arith.cmpi eq, %1, %28 : vector<32x128xi32>
    %30 = arith.ori %24, %29 : vector<32x128xi1>
    %31 = arith.extui %30 : vector<32x128xi1> to vector<32x128xi32>
    %32 = arith.sitofp %31 : vector<32x128xi32> to vector<32x128xf32>
    %33 = arith.truncf %32 : vector<32x128xf32> to vector<32x128xbf16>
    %c0_1 = arith.constant 0 : index
    %c0_2 = arith.constant 0 : index
    %34 = vector.load %arg2[%c0_1, %c0_2] : memref<128x32xbf16, #tpu.memory_space<vmem>>, vector<128x32xbf16>
    %cst = arith.constant dense<0.000000e+00> : vector<32x32xf32>
    %35 = tpu.matmul %33, %34, %cst {dimension_numbers = #tpu.dot_dimension_numbers<[1], [0], [0], [1], [0, 0, 1, 1], [], []>} : vector<32x128xbf16>, vector<128x32xbf16>, vector<32x32xf32> -> vector<32x32xf32>
    %c0_3 = arith.constant 0 : index
    %c0_4 = arith.constant 0 : index
    %36 = vector.load %arg3[%c0_3, %c0_4] : memref<128x32xbf16, #tpu.memory_space<vmem>>, vector<128x32xbf16>
    %cst_5 = arith.constant dense<0.000000e+00> : vector<32x32xf32>
    %37 = tpu.matmul %33, %36, %cst_5 {dimension_numbers = #tpu.dot_dimension_numbers<[1], [0], [0], [1], [0, 0, 1, 1], [], []>} : vector<32x128xbf16>, vector<128x32xbf16>, vector<32x32xf32> -> vector<32x32xf32>
    %38 = arith.addf %35, %37 : vector<32x32xf32>
    %c0_6 = arith.constant 0 : index
    %c0_7 = arith.constant 0 : index
    %39 = vector.load %arg4[%c0_6, %c0_7] : memref<32x32xf32, #tpu.memory_space<vmem>>, vector<32x32xf32>
    tpu.vector_store %arg4[%c0_6, %c0_7], %38 {strides = array<i32>} : memref<32x32xf32, #tpu.memory_space<vmem>>, vector<32x32xf32>,
    return
  }
  func.func @transform_0(%arg0: i32) -> (i32, i32) {
    %c0_i32 = arith.constant 0 : i32
    %c0_i32_0 = arith.constant 0 : i32
    return %arg0, %c0_i32 : i32, i32
  }
  func.func @transform_1(%arg0: i32) -> (i32, i32) {
    %c0_i32 = arith.constant 0 : i32
    %c0_i32_0 = arith.constant 0 : i32
    %c0_i32_1 = arith.constant 0 : i32
    return %c0_i32, %c0_i32_0 : i32, i32
  }
  func.func @transform_2(%arg0: i32) -> (i32, i32) {
    %c0_i32 = arith.constant 0 : i32
    %c0_i32_0 = arith.constant 0 : i32
    %c0_i32_1 = arith.constant 0 : i32
    return %c0_i32, %c0_i32_0 : i32, i32
  }
  func.func @transform_3(%arg0: i32) -> (i32, i32) {
    %c0_i32 = arith.constant 0 : i32
    %c0_i32_0 = arith.constant 0 : i32
    return %arg0, %c0_i32 : i32, i32
  }
}

</mosaic_0001>

<llo_original>
// kernel: tpu_custom_call.1
$region0: #{tpu_custom_call.1}
  #allocation0 [shape = 'u32[]', space=smem, size = 0x4, offset = 0x4, fixed_abs, tag = 'smem constant byte address 0x4 - core index']
  #allocation1 [shape = 'u32[144,128]{1,0:T(1,128)}', space=vmem, size = 0x12000, scoped, tag = 'internal scratch']
  %s0 = inlined_call_operand.vmem [shape: s32[32,5], index: 0, kind: input, shape index: {}]
  %s1 = inlined_call_operand.vmem [shape: bf16[128,32], index: 1, kind: input, shape index: {}]
  %s2 = inlined_call_operand.vmem [shape: bf16[128,32], index: 2, kind: input, shape index: {}]
  %s3 = inlined_call_operand.hbm [shape: f32[32,32], index: 3, kind: output, shape index: {}]
  %s4 = sld [smem:[#allocation0]]
  $region22: #{tpu_custom_call.1} parent=0
    _
  %s6 = ssub.s32 1, %s4
  %s7 = scalar_select 0, %s6, %s4
  $region1: #{tpu_custom_call.1} parent=0
    #allocation2 [shape = 'u8[16384]{0}', space=vmem, size = 0x4000, scoped, tag = 'output window, operand 0, single buffered']
    #allocation3 [shape = 's32[1]{0}', space=sflag, size = 0x4, scoped, tag = 'scoped memory for tpu_custom_call.1']
    %8 = vsyncpa [#allocation3], 0
    // Predicated region
    $region2: #{tpu_custom_call.1} parent=1 // pred_check
      _
    $region3: #{tpu_custom_call.1} parent=1 // pred_check_branch
      %10 = sbr.rel (0) target = $region5
    $region4: #{tpu_custom_call.1} parent=1 // pred_region
      _
    $region5: #{tpu_custom_call.1} parent=1 // pred_fallthru
      _
    // Predicated region
    $region6: #{tpu_custom_call.1} parent=1 // pred_check
      _
    $region7: #{tpu_custom_call.1} parent=1 // pred_check_branch
      %12 = sbr.rel (0) target = $region9
    $region8: #{tpu_custom_call.1} parent=1 // pred_region
      _
    $region9: #{tpu_custom_call.1} parent=1 // pred_fallthru
      _
    // Predicated region
    $region10: #{tpu_custom_call.1} parent=1 // pred_check
      _
    $region11: #{tpu_custom_call.1} parent=1 // pred_check_branch
      %14 = sbr.rel (0) target = $region13
    $region12: #{tpu_custom_call.1} parent=1 // pred_region
      _
    $region13: #{tpu_custom_call.1} parent=1 // pred_fallthru
      _
    %v16 = vld [vmem:[%s0] sm:$0xff]
    %v17 = vld [vmem:[%s0 + $0x8] sm:$0xff]
    %v18 = vld [vmem:[%s0 + $0x10] sm:$0xff]
    %v19 = vld [vmem:[%s0 + $0x18] sm:$0xff]
    %v20 = vlaneseq
    %v21 = vand.u32 %v20, 127
    %22 = vset.pattern.permute.xlu0 0
    %23 = vperm.xlu0 %22, %v16
    %v24 = vpop.permute.xlu0 %23
    %25 = vset.pattern.permute.xlu0 0
    %26 = vperm.xlu0 %25, %v17
    %v27 = vpop.permute.xlu0 %26
    %28 = vset.pattern.permute.xlu0 0
    %29 = vperm.xlu0 %28, %v18
    %v30 = vpop.permute.xlu0 %29
    %31 = vset.pattern.permute.xlu0 0
    %32 = vperm.xlu0 %31, %v19
    %v33 = vpop.permute.xlu0 %32
    %vm34 = vcmp.eq.s32.totalorder %v21, %v24
    %vm35 = vcmp.eq.s32.totalorder %v21, %v27
    %vm36 = vcmp.eq.s32.totalorder %v21, %v30
    %vm37 = vcmp.eq.s32.totalorder %v21, %v33
    %v38 = vadd.s32 %v16, 13
    %v39 = vadd.s32 %v17, 13
    %v40 = vadd.s32 %v18, 13
    %v41 = vadd.s32 %v19, 13
    %42 = vset.pattern.permute.xlu0 1
    %43 = vperm.xlu0 %42, %v38
    %v44 = vpop.permute.xlu0 %43
    %45 = vset.pattern.permute.xlu0 1
    %46 = vperm.xlu0 %45, %v39
    %v47 = vpop.permute.xlu0 %46
    %48 = vset.pattern.permute.xlu0 1
    %49 = vperm.xlu0 %48, %v40
    %v50 = vpop.permute.xlu0 %49
    %51 = vset.pattern.permute.xlu0 1
    %52 = vperm.xlu0 %51, %v41
    %v53 = vpop.permute.xlu0 %52
    %vm54 = vcmp.eq.s32.totalorder %v21, %v44
    %vm55 = vcmp.eq.s32.totalorder %v21, %v47
    %vm56 = vcmp.eq.s32.totalorder %v21, %v50
    %vm57 = vcmp.eq.s32.totalorder %v21, %v53
    %vm58 = vmor %vm34, %vm54
    %vm59 = vmor %vm35, %vm55
    %vm60 = vmor %vm36, %vm56
    %vm61 = vmor %vm37, %vm57
    %v62 = vadd.s32 %v16, 45
    %v63 = vadd.s32 %v17, 45
    %v64 = vadd.s32 %v18, 45
    %v65 = vadd.s32 %v19, 45
    %66 = vset.pattern.permute.xlu0 2
    %67 = vperm.xlu0 %66, %v62
    %v68 = vpop.permute.xlu0 %67
    %69 = vset.pattern.permute.xlu0 2
    %70 = vperm.xlu0 %69, %v63
    %v71 = vpop.permute.xlu0 %70
    %72 = vset.pattern.permute.xlu0 2
    %73 = vperm.xlu0 %72, %v64
    %v74 = vpop.permute.xlu0 %73
    %75 = vset.pattern.permute.xlu0 2
    %76 = vperm.xlu0 %75, %v65
    %v77 = vpop.permute.xlu0 %76
    %vm78 = vcmp.eq.s32.totalorder %v21, %v68
    %vm79 = vcmp.eq.s32.totalorder %v21, %v71
    %vm80 = vcmp.eq.s32.totalorder %v21, %v74
    %vm81 = vcmp.eq.s32.totalorder %v21, %v77
    %vm82 = vmor %vm58, %vm78
    %vm83 = vmor %vm59, %vm79
    %vm84 = vmor %vm60, %vm80
    %vm85 = vmor %vm61, %vm81
    %v86 = vadd.s32 %v16, 52
    %v87 = vadd.s32 %v17, 52
    %v88 = vadd.s32 %v18, 52
    %v89 = vadd.s32 %v19, 52
    %90 = vset.pattern.permute.xlu0 3
    %91 = vperm.xlu0 %90, %v86
    %v92 = vpop.permute.xlu0 %91
    %93 = vset.pattern.permute.xlu0 3
    %94 = vperm.xlu0 %93, %v87
    %v95 = vpop.permute.xlu0 %94
    %96 = vset.pattern.permute.xlu0 3
    %97 = vperm.xlu0 %96, %v88
    %v98 = vpop.permute.xlu0 %97
    %99 = vset.pattern.permute.xlu0 3
    %100 = vperm.xlu0 %99, %v89
    %v101 = vpop.permute.xlu0 %100
    %vm102 = vcmp.eq.s32.totalorder %v21, %v92
    %vm103 = vcmp.eq.s32.totalorder %v21, %v95
    %vm104 = vcmp.eq.s32.totalorder %v21, %v98
    %vm105 = vcmp.eq.s32.totalorder %v21, %v101
    %vm106 = vmor %vm82, %vm102
    %vm107 = vmor %vm83, %vm103
    %vm108 = vmor %vm84, %vm104
    %vm109 = vmor %vm85, %vm105
    %v110 = vadd.s32 %v16, 76
    %v111 = vadd.s32 %v17, 76
    %v112 = vadd.s32 %v18, 76
    %v113 = vadd.s32 %v19, 76
    %114 = vset.pattern.permute.xlu0 4
    %115 = vperm.xlu0 %114, %v110
    %v116 = vpop.permute.xlu0 %115
    %117 = vset.pattern.permute.xlu0 4
    %118 = vperm.xlu0 %117, %v111
    %v119 = vpop.permute.xlu0 %118
    %120 = vset.pattern.permute.xlu0 4
    %121 = vperm.xlu0 %120, %v112
    %v122 = vpop.permute.xlu0 %121
    %123 = vset.pattern.permute.xlu0 4
    %124 = vperm.xlu0 %123, %v113
    %v125 = vpop.permute.xlu0 %124
    %vm126 = vcmp.eq.s32.totalorder %v21, %v116
    %vm127 = vcmp.eq.s32.totalorder %v21, %v119
    %vm128 = vcmp.eq.s32.totalorder %v21, %v122
    %vm129 = vcmp.eq.s32.totalorder %v21, %v125
    %vm130 = vmor %vm106, %vm126
    %vm131 = vmor %vm107, %vm127
    %vm132 = vmor %vm108, %vm128
    %vm133 = vmor %vm109, %vm129
    %v134 = vsel %vm130, 1, 0
    %v135 = vsel %vm131, 1, 0
    %v136 = vsel %vm132, 1, 0
    %v137 = vsel %vm133, 1, 0
    %v138 = vcvt.s32.f32 %v134
    %v139 = vcvt.s32.f32 %v135
    %v140 = vcvt.s32.f32 %v136
    %v141 = vcvt.s32.f32 %v137
    %v142 = vpack.c.bf16 %v139, %v138
    %v143 = vpack.c.bf16 %v141, %v140
    %v144 = vld [vmem:[%s1] sm:$0xf]
    %v145 = vld [vmem:[%s1 + $0x4] sm:$0xf]
    %v146 = vld [vmem:[%s1 + $0x8] sm:$0xf]
    %v147 = vld [vmem:[%s1 + $0xc] sm:$0xf]
    %v148 = vld [vmem:[%s1 + $0x10] sm:$0xf]
    %v149 = vld [vmem:[%s1 + $0x14] sm:$0xf]
    %v150 = vld [vmem:[%s1 + $0x18] sm:$0xf]
    %v151 = vld [vmem:[%s1 + $0x1c] sm:$0xf]
    %v152 = vld [vmem:[%s1 + $0x20] sm:$0xf]
    %v153 = vld [vmem:[%s1 + $0x24] sm:$0xf]
    %v154 = vld [vmem:[%s1 + $0x28] sm:$0xf]
    %v155 = vld [vmem:[%s1 + $0x2c] sm:$0xf]
    %v156 = vld [vmem:[%s1 + $0x30] sm:$0xf]
    %v157 = vld [vmem:[%s1 + $0x34] sm:$0xf]
    %v158 = vld [vmem:[%s1 + $0x38] sm:$0xf]
    %v159 = vld [vmem:[%s1 + $0x3c] sm:$0xf]
    %v160 = vld [vmem:[%s2] sm:$0xf]
    %v161 = vld [vmem:[%s2 + $0x4] sm:$0xf]
    %v162 = vld [vmem:[%s2 + $0x8] sm:$0xf]
    %v163 = vld [vmem:[%s2 + $0xc] sm:$0xf]
    %v164 = vld [vmem:[%s2 + $0x10] sm:$0xf]
    %v165 = vld [vmem:[%s2 + $0x14] sm:$0xf]
    %v166 = vld [vmem:[%s2 + $0x18] sm:$0xf]
    %v167 = vld [vmem:[%s2 + $0x1c] sm:$0xf]
    %v168 = vld [vmem:[%s2 + $0x20] sm:$0xf]
    %v169 = vld [vmem:[%s2 + $0x24] sm:$0xf]
    %v170 = vld [vmem:[%s2 + $0x28] sm:$0xf]
    %v171 = vld [vmem:[%s2 + $0x2c] sm:$0xf]
    %v172 = vld [vmem:[%s2 + $0x30] sm:$0xf]
    %v173 = vld [vmem:[%s2 + $0x34] sm:$0xf]
    %v174 = vld [vmem:[%s2 + $0x38] sm:$0xf]
    %v175 = vld [vmem:[%s2 + $0x3c] sm:$0xf]
    %v192 = vunpack.c.l.b16 %v160
    %v193 = vunpack.c.l.b16 %v161
    %v194 = vunpack.c.l.b16 %v162
    %v195 = vunpack.c.l.b16 %v163
    %v196 = vunpack.c.l.b16 %v164
    %v197 = vunpack.c.l.b16 %v165
    %v198 = vunpack.c.l.b16 %v166
    %v199 = vunpack.c.l.b16 %v167
    %v200 = vunpack.c.l.b16 %v168
    %v201 = vunpack.c.l.b16 %v169
    %v202 = vunpack.c.l.b16 %v170
    %v203 = vunpack.c.l.b16 %v171
    %v204 = vunpack.c.l.b16 %v172
    %v205 = vunpack.c.l.b16 %v173
    %v206 = vunpack.c.l.b16 %v174
    %v207 = vunpack.c.l.b16 %v175
    %v208 = vpack.c.b16 %v193, %v192
    %v209 = vpack.c.b16 %v195, %v194
    %v210 = vpack.c.b16 %v197, %v196
    %v211 = vpack.c.b16 %v199, %v198
    %v212 = vpack.c.b16 %v201, %v200
    %v213 = vpack.c.b16 %v203, %v202
    %v214 = vpack.c.b16 %v205, %v204
    %v215 = vpack.c.b16 %v207, %v206
    %224 = vmatprep.subr.bf16.mxu0 0
    %225 = vmatpush1.bf16.msra.mxu0 %v215
    %226 = vmatprep.subr.bf16.mxu0 0
    %227 = vmatpush1.bf16.msra.mxu0 %v214
    %228 = vmatprep.subr.bf16.mxu0 0
    %229 = vmatpush1.bf16.msra.mxu0 %v213
    %230 = vmatprep.subr.bf16.mxu0 0
    %231 = vmatpush1.bf16.msra.mxu0 %v212
    %232 = vmatprep.subr.bf16.mxu0 0
    %233 = vmatpush1.bf16.msra.mxu0 %v211
    %234 = vmatprep.subr.bf16.mxu0 0
    %235 = vmatpush1.bf16.msra.mxu0 %v210
    %236 = vmatprep.subr.bf16.mxu0 0
    %237 = vmatpush1.bf16.msra.mxu0 %v209
    %238 = vmatprep.subr.bf16.mxu0 0
    %239 = vmatpush1.bf16.msra.mxu0 %v208
    %240 = vmatprep.subr.bf16.mxu0 0
    %241 = vmatpush2.bf16.msra.mxu0 0
    %242 = vmatprep.subr.bf16.mxu0 0
    %243 = vmatpush2.bf16.msra.mxu0 0
    %244 = vmatprep.subr.bf16.mxu0 0
    %245 = vmatpush2.bf16.msra.mxu0 0
    %246 = vmatprep.subr.bf16.mxu0 0
    %247 = vmatpush2.bf16.msra.mxu0 0
    %248 = vmatprep.subr.bf16.mxu0 0
    %249 = vmatpush2.bf16.msra.mxu0 0
    %250 = vmatprep.subr.bf16.mxu0 0
    %251 = vmatpush2.bf16.msra.mxu0 0
    %252 = vmatprep.subr.bf16.mxu0 0
    %253 = vmatpush2.bf16.msra.mxu0 0
    %254 = vmatprep.subr.bf16.mxu0 0
    %255 = vmatpush2.bf16.msra.mxu0 0
    %256 = vmatprep.mubr.bf16.mxu0 0
    %257 = vmatmul.mubr.bf16.gmra.mxu0 %v142
    %v258 = vpop.f32.mrf.mxu0
    %v259 = vadd.f32 0.0, %v258
    %v260 = vpop.f32.mrf.mxu0
    %v261 = vpop.f32.mrf.mxu0
    %v262 = vadd.f32 0.0, %v261
    %v263 = vpop.f32.mrf.mxu0
    %264 = vmatprep.mubr.bf16.mxu0 0
    %265 = vmatmul.mubr.bf16.gmra.mxu0 %v143
    %v266 = vpop.f32.mrf.mxu0
    %v267 = vadd.f32 0.0, %v266
    %v268 = vpop.f32.mrf.mxu0
    %v269 = vpop.f32.mrf.mxu0
    %v270 = vadd.f32 0.0, %v269
    %v271 = vpop.f32.mrf.mxu0
    %272 = vdwg.mxu0
    %v289 = vunpack.c.l.b16 %v144
    %v290 = vunpack.c.l.b16 %v145
    %v291 = vunpack.c.l.b16 %v146
    %v292 = vunpack.c.l.b16 %v147
    %v293 = vunpack.c.l.b16 %v148
    %v294 = vunpack.c.l.b16 %v149
    %v295 = vunpack.c.l.b16 %v150
    %v296 = vunpack.c.l.b16 %v151
    %v297 = vunpack.c.l.b16 %v152
    %v298 = vunpack.c.l.b16 %v153
    %v299 = vunpack.c.l.b16 %v154
    %v300 = vunpack.c.l.b16 %v155
    %v301 = vunpack.c.l.b16 %v156
    %v302 = vunpack.c.l.b16 %v157
    %v303 = vunpack.c.l.b16 %v158
    %v304 = vunpack.c.l.b16 %v159
    %v305 = vpack.c.b16 %v290, %v289
    %v306 = vpack.c.b16 %v292, %v291
    %v307 = vpack.c.b16 %v294, %v293
    %v308 = vpack.c.b16 %v296, %v295
    %v309 = vpack.c.b16 %v298, %v297
    %v310 = vpack.c.b16 %v300, %v299
    %v311 = vpack.c.b16 %v302, %v301
    %v312 = vpack.c.b16 %v304, %v303
    %321 = vmatprep.subr.bf16.mxu0 0
    %322 = vmatpush1.bf16.msra.mxu0 %v312
    %323 = vmatprep.subr.bf16.mxu0 0
    %324 = vmatpush1.bf16.msra.mxu0 %v311
    %325 = vmatprep.subr.bf16.mxu0 0
    %326 = vmatpush1.bf16.msra.mxu0 %v310
    %327 = vmatprep.subr.bf16.mxu0 0
    %328 = vmatpush1.bf16.msra.mxu0 %v309
    %329 = vmatprep.subr.bf16.mxu0 0
    %330 = vmatpush1.bf16.msra.mxu0 %v308
    %331 = vmatprep.subr.bf16.mxu0 0
    %332 = vmatpush1.bf16.msra.mxu0 %v307
    %333 = vmatprep.subr.bf16.mxu0 0
    %334 = vmatpush1.bf16.msra.mxu0 %v306
    %335 = vmatprep.subr.bf16.mxu0 0
    %336 = vmatpush1.bf16.msra.mxu0 %v305
    %337 = vmatprep.subr.bf16.mxu0 0
    %338 = vmatpush2.bf16.msra.mxu0 0
    %339 = vmatprep.subr.bf16.mxu0 0
    %340 = vmatpush2.bf16.msra.mxu0 0
    %341 = vmatprep.subr.bf16.mxu0 0
    %342 = vmatpush2.bf16.msra.mxu0 0
    %343 = vmatprep.subr.bf16.mxu0 0
    %344 = vmatpush2.bf16.msra.mxu0 0
    %345 = vmatprep.subr.bf16.mxu0 0
    %346 = vmatpush2.bf16.msra.mxu0 0
    %347 = vmatprep.subr.bf16.mxu0 0
    %348 = vmatpush2.bf16.msra.mxu0 0
    %349 = vmatprep.subr.bf16.mxu0 0
    %350 = vmatpush2.bf16.msra.mxu0 0
    %351 = vmatprep.subr.bf16.mxu0 0
    %352 = vmatpush2.bf16.msra.mxu0 0
    %353 = vmatprep.mubr.bf16.mxu0 0
    %354 = vmatmul.mubr.bf16.gmra.mxu0 %v142
    %v355 = vpop.f32.mrf.mxu0
    %v356 = vadd.f32 %v259, %v355
    %v357 = vpop.f32.mrf.mxu0
    %v358 = vpop.f32.mrf.mxu0
    %v359 = vadd.f32 %v262, %v358
    %v360 = vpop.f32.mrf.mxu0
    %361 = vmatprep.mubr.bf16.mxu0 0
    %362 = vmatmul.mubr.bf16.gmra.mxu0 %v143
    %v363 = vpop.f32.mrf.mxu0
    %v364 = vadd.f32 %v267, %v363
    %v365 = vpop.f32.mrf.mxu0
    %v366 = vpop.f32.mrf.mxu0
    %v367 = vadd.f32 %v270, %v366
    %v368 = vpop.f32.mrf.mxu0
    %369 = vdwg.mxu0
    %vm370 = vcmask 261120
    %371 = vst.msk [vmem:[#allocation2] sm:$0xff] %vm370, %v356
    %372 = vst.msk [vmem:[#allocation2 + $0x8] sm:$0xff] %vm370, %v359
    %373 = vst.msk [vmem:[#allocation2 + $0x10] sm:$0xff] %vm370, %v364
    %374 = vst.msk [vmem:[#allocation2 + $0x18] sm:$0xff] %vm370, %v367
    // Predicated region
    $region14: #{tpu_custom_call.1} parent=1 // pred_check
      _
    $region15: #{tpu_custom_call.1} parent=1 // pred_check_branch
      %376 = sbr.rel (0) target = $region17
    $region16: #{tpu_custom_call.1} parent=1 // pred_region
      %s378 = ssub.s32 512, 512
      %379 = vsyncadd [#allocation3], %s378
      %s380 = sshll.u32 [#allocation2], 4
      %s381 = int_to_ptr.vmem [resolvable:$true] %s380
      %386 = dma.vmem_to_hbm [thread:$0]  %s381, 512, %s3, [#allocation3], 128, 128, 8
    $region17: #{tpu_custom_call.1} parent=1 // pred_fallthru
      _
    // Predicated region
    $region18: #{tpu_custom_call.1} parent=1 // pred_check
      _
    $region19: #{tpu_custom_call.1} parent=1 // pred_check_branch
      %388 = sbr.rel (0) target = $region21
    $region20: #{tpu_custom_call.1} parent=1 // pred_region
      %389 = dma.done [#allocation3], 512
    $region21: #{tpu_custom_call.1} parent=1 // pred_fallthru
      _
    %390 = vsyncpa [#allocation3], 1

</llo_original>
